<compile_context>
chip_gen: v5e
topology: v5e:2x2
jax: 0.10.0
libtpu: 0.0.40
codegen_flags: <defaults>
</compile_context>

<pallas_src>
import functools

import jax
import jax.numpy as jnp
from jax.experimental import pallas as pl
from jax.experimental.pallas import tpu as pltpu

BN_EPS = 1e-5


def _round_up(x, m):
    return (x + m - 1) // m * m


# --------------------------------------------------------------------------
# Kernel 1: h = x @ W + b   (bf16 operands, f32 accumulate, bf16 store)
# --------------------------------------------------------------------------
def _linear_kernel(x_ref, w_ref, b_ref, h_ref):
    h = jnp.dot(x_ref[...], w_ref[...], preferred_element_type=jnp.float32)
    h = h + b_ref[...]
    h_ref[...] = h.astype(h_ref.dtype)


# --------------------------------------------------------------------------
# Kernel 2: y = A_norm @ h  with per-row-tile partial BN statistics
#   grid = (rows, k-reduction); f32 accumulator in VMEM scratch.
# --------------------------------------------------------------------------
def _aggregate_kernel(a_ref, h_ref, y_ref, stats_ref, acc_ref):
    k = pl.program_id(1)

    @pl.when(k == 0)
    def _():
        acc_ref[...] = jnp.zeros_like(acc_ref)

    acc_ref[...] += jnp.dot(a_ref[...], h_ref[...],
                            preferred_element_type=jnp.float32)

    @pl.when(k == pl.num_programs(1) - 1)
    def _():
        y = acc_ref[...]
        y_ref[...] = y.astype(y_ref.dtype)
        colsum = jnp.sum(y, axis=0, keepdims=True)        # (1, Fout)
        colsq = jnp.sum(y * y, axis=0, keepdims=True)     # (1, Fout)
        stats_ref[...] = jnp.concatenate([colsum, colsq], axis=0)[None]


# --------------------------------------------------------------------------
# Kernel 3: out = relu(y * scale + shift) + x_residual  (fused BN affine)
# --------------------------------------------------------------------------
def _bn_apply_kernel(y_ref, x_ref, st_ref, o_ref):
    y = y_ref[...]
    scale = st_ref[0:1, :]
    shift = st_ref[1:2, :]
    out = jnp.maximum(y * scale + shift, 0.0) + x_ref[...].astype(jnp.float32)
    o_ref[...] = out.astype(o_ref.dtype)


def _vmem_limit(n_bytes):
    # computed working set + headroom, capped below v7x's 64 MiB physical VMEM
    return int(min(n_bytes + (8 << 20), 60 << 20))


# --------------------------------------------------------------------------
# Forward pipeline (jitted): pad -> linear -> aggregate+stats -> bn apply
# --------------------------------------------------------------------------
@jax.jit
def _gcn_forward(x, a_norm, w, b, gamma, beta):
    n, f_in = x.shape
    f_out = w.shape[1]

    tile = 256 if n > 1024 else 128
    n_pad = _round_up(n, tile)
    fi_pad = _round_up(f_in, 128)
    fo_pad = _round_up(f_out, 128)
    grid_m = n_pad // tile
    grid_k = n_pad // tile

    x_f32 = x.astype(jnp.float32)
    x_p = jnp.zeros((n_pad, fi_pad), jnp.float32).at[:n, :f_in].set(x_f32)
    x_bf = x_p.astype(jnp.bfloat16)
    a_p = jnp.zeros((n_pad, n_pad), jnp.bfloat16).at[:n, :n].set(
        a_norm.astype(jnp.bfloat16))
    w_p = jnp.zeros((fi_pad, fo_pad), jnp.bfloat16).at[:f_in, :f_out].set(
        w.astype(jnp.bfloat16))
    b_p = jnp.zeros((1, fo_pad), jnp.float32).at[:, :f_out].set(
        b.reshape(1, -1).astype(jnp.float32))
    gamma_p = jnp.zeros((fo_pad,), jnp.float32).at[:f_out].set(
        gamma.reshape(-1).astype(jnp.float32))
    beta_p = jnp.zeros((fo_pad,), jnp.float32).at[:f_out].set(
        beta.reshape(-1).astype(jnp.float32))

    # ---- kernel 1: h = x @ W + b ------------------------------------------
    lin_vmem = 2 * (tile * fi_pad * 2) + 2 * (fi_pad * fo_pad * 2) + \
        2 * (8 * fo_pad * 4) + 2 * (tile * fo_pad * 2)
    h = pl.pallas_call(
        _linear_kernel,
        out_shape=jax.ShapeDtypeStruct((n_pad, fo_pad), jnp.bfloat16),
        grid=(grid_m,),
        in_specs=[
            pl.BlockSpec((tile, fi_pad), lambda i: (i, 0)),
            pl.BlockSpec((fi_pad, fo_pad), lambda i: (0, 0)),
            pl.BlockSpec((1, fo_pad), lambda i: (0, 0)),
        ],
        out_specs=pl.BlockSpec((tile, fo_pad), lambda i: (i, 0)),
        compiler_params=pltpu.CompilerParams(
            dimension_semantics=("parallel",),
            vmem_limit_bytes=_vmem_limit(lin_vmem)),
        cost_estimate=pl.CostEstimate(
            flops=2 * n_pad * fi_pad * fo_pad, transcendentals=0,
            bytes_accessed=n_pad * fi_pad * 2 + fi_pad * fo_pad * 2
            + n_pad * fo_pad * 2),
    )(x_bf, w_p, b_p)

    # ---- kernel 2: y = A @ h  + partial BN stats --------------------------
    agg_vmem = 2 * (tile * tile * 2) + 2 * (tile * fo_pad * 2) + \
        2 * (tile * fo_pad * 4) + 2 * (8 * fo_pad * 4) + tile * fo_pad * 4
    y, stats = pl.pallas_call(
        _aggregate_kernel,
        out_shape=(
            jax.ShapeDtypeStruct((n_pad, fo_pad), jnp.float32),
            jax.ShapeDtypeStruct((grid_m, 2, fo_pad), jnp.float32),
        ),
        grid=(grid_m, grid_k),
        in_specs=[
            pl.BlockSpec((tile, tile), lambda i, k: (i, k)),
            pl.BlockSpec((tile, fo_pad), lambda i, k: (k, 0)),
        ],
        out_specs=(
            pl.BlockSpec((tile, fo_pad), lambda i, k: (i, 0)),
            pl.BlockSpec((1, 2, fo_pad), lambda i, k: (i, 0, 0)),
        ),
        scratch_shapes=[pltpu.VMEM((tile, fo_pad), jnp.float32)],
        compiler_params=pltpu.CompilerParams(
            dimension_semantics=("parallel", "arbitrary"),
            vmem_limit_bytes=_vmem_limit(agg_vmem)),
        cost_estimate=pl.CostEstimate(
            flops=2 * n_pad * n_pad * fo_pad, transcendentals=0,
            bytes_accessed=n_pad * n_pad * 2 + n_pad * fo_pad * 2
            + n_pad * fo_pad * 4),
    )(a_p, h)

    # ---- tiny JAX reduction of partial stats -> fused BN scale/shift ------
    # Padded rows of y are exactly zero, so dividing by the true N is correct.
    total = jnp.sum(stats, axis=0)                     # (2, fo_pad)
    mean = total[0] / n
    var = jnp.maximum(total[1] / n - mean * mean, 0.0)  # biased variance
    scale = gamma_p * jax.lax.rsqrt(var + BN_EPS)
    shift = beta_p - mean * scale
    st = jnp.stack([scale, shift], axis=0)             # (2, fo_pad)

    # ---- kernel 3: relu(y*s + t) + residual -------------------------------
    apply_vmem = 4 * (2 * tile * fo_pad * 4) + 2 * (8 * fo_pad * 4)
    out_p = pl.pallas_call(
        _bn_apply_kernel,
        out_shape=jax.ShapeDtypeStruct((n_pad, fo_pad), x.dtype),
        grid=(grid_m,),
        in_specs=[
            pl.BlockSpec((tile, fo_pad), lambda i: (i, 0)),
            pl.BlockSpec((tile, fo_pad), lambda i: (i, 0)),
            pl.BlockSpec((2, fo_pad), lambda i: (0, 0)),
        ],
        out_specs=pl.BlockSpec((tile, fo_pad), lambda i: (i, 0)),
        compiler_params=pltpu.CompilerParams(
            dimension_semantics=("parallel",),
            vmem_limit_bytes=_vmem_limit(apply_vmem)),
    )(y, x_p, st)

    return out_p[:n, :f_out]


def _normalized_adjacency(edge_index, num_nodes):
    """Dense D^-1/2 (A + I) D^-1/2 from a [2, E] edge_index (f32 stats)."""
    src, dst = edge_index[0], edge_index[1]
    adj = jnp.zeros((num_nodes, num_nodes), dtype=jnp.float32)
    # message flows src -> dst: row = dst (receiver), col = src (sender)
    adj = adj.at[dst, src].set(1.0)
    # self loops only where absent (set, not add, so existing self edges stay 1)
    diag = jnp.arange(num_nodes)
    adj = adj.at[diag, diag].set(1.0)
    deg = jnp.sum(adj, axis=1)
    d_inv_sqrt = jnp.where(deg > 0, jax.lax.rsqrt(deg), 0.0)
    return adj * d_inv_sqrt[:, None] * d_inv_sqrt[None, :]


class ConvPallas:
    """JAX/Pallas equivalent of the PyTorch `ConvDGL` wrapper module.

    Implements the pos=2 / bn=True (batch stats) / act=ReLU / dropout=0 /
    res=True configuration with a single GCN op in the search space.
    """

    def __init__(self, space, input_dim, output_dim, pos=2, dropout=0.0,
                 bn=True, res=True, seed=0):
        assert pos == 2 and bn and res and dropout == 0.0, \
            "kernel implements the pos=2 / bn / res / no-dropout configuration"
        assert input_dim == output_dim, "residual requires input_dim == output_dim"
        self.space = list(space)
        self.input_dim = input_dim
        self.output_dim = output_dim
        self.params = {}
        key = jax.random.PRNGKey(seed)
        for name in self.space:
            key, kw = jax.random.split(key)
            limit = jnp.sqrt(6.0 / (input_dim + output_dim))
            w = jax.random.uniform(kw, (input_dim, output_dim),
                                   minval=-limit, maxval=limit,
                                   dtype=jnp.float32)
            b = jnp.zeros((output_dim,), jnp.float32)
            gamma = jnp.ones((output_dim,), jnp.float32)
            beta = jnp.zeros((output_dim,), jnp.float32)
            self.params[name] = (w, b, gamma, beta)

    def __call__(self, x, edge_index, key):
        w, b, gamma, beta = self.params[key]
        a_norm = _normalized_adjacency(edge_index, x.shape[0])
        return _gcn_forward(x, a_norm, w, b, gamma, beta)


if __name__ == "__main__":
    rng = jax.random.PRNGKey(0)
    k_x, k_src, k_dst = jax.random.split(rng, 3)

    num_nodes, feat_dim, num_edges = 16, 32, 40
    x = jax.random.normal(k_x, (num_nodes, feat_dim), dtype=jnp.float32)
    edge_index = jnp.stack([
        jax.random.randint(k_src, (num_edges,), 0, num_nodes),
        jax.random.randint(k_dst, (num_edges,), 0, num_nodes),
    ]).astype(jnp.int32)

    conv = ConvPallas(space=["gcn"], input_dim=feat_dim, output_dim=feat_dim)
    out = conv(x, edge_index, key="gcn")
    out = jax.block_until_ready(out)

    assert out.shape == (num_nodes, feat_dim)
    assert bool(jnp.all(jnp.isfinite(out)))
    print("KERNEL_OK")
</pallas_src>

<mosaic_0001>
module attributes {stable_mosaic.version = 11 : i64} {
  func.func @_linear_kernel(%arg0: i32, %arg1: memref<128x128xbf16, #tpu.memory_space<vmem>>, %arg2: memref<128x128xbf16, #tpu.memory_space<vmem>>, %arg3: memref<1x128xf32, #tpu.memory_space<vmem>>, %arg4: memref<128x128xbf16, #tpu.memory_space<vmem>>) attributes {dimension_semantics = [#tpu.dimension_semantics<parallel>], iteration_bounds = array<i64: 1>, scalar_prefetch = 0 : i64, scratch_operands = 0 : i64, tpu.core_type = #tpu.core_type<tc>, window_params = [{transform_indices = @transform_0, window_bounds = array<i64: 128, 128>}, {pipeline_mode = #tpu.pipeline_mode<synchronous>, transform_indices = @transform_1, window_bounds = array<i64: 128, 128>}, {pipeline_mode = #tpu.pipeline_mode<synchronous>, transform_indices = @transform_2, window_bounds = array<i64: 1, 128>}, {transform_indices = @transform_3, window_bounds = array<i64: 128, 128>}]} {
    %c0 = arith.constant 0 : index
    %c0_0 = arith.constant 0 : index
    %0 = vector.load %arg1[%c0, %c0_0] : memref<128x128xbf16, #tpu.memory_space<vmem>>, vector<128x128xbf16>
    %c0_1 = arith.constant 0 : index
    %c0_2 = arith.constant 0 : index
    %1 = vector.load %arg2[%c0_1, %c0_2] : memref<128x128xbf16, #tpu.memory_space<vmem>>, vector<128x128xbf16>
    %cst = arith.constant dense<0.000000e+00> : vector<128x128xf32>
    %2 = tpu.matmul %0, %1, %cst {dimension_numbers = #tpu.dot_dimension_numbers<[1], [0], [0], [1], [0, 0, 1, 1], [], []>} : vector<128x128xbf16>, vector<128x128xbf16>, vector<128x128xf32> -> vector<128x128xf32>
    %c0_3 = arith.constant 0 : index
    %c0_4 = arith.constant 0 : index
    %3 = vector.load %arg3[%c0_3, %c0_4] : memref<1x128xf32, #tpu.memory_space<vmem>>, vector<1x128xf32>
    %4 = vector.broadcast %3 : vector<1x128xf32> to vector<128x128xf32>
    %5 = arith.addf %2, %4 : vector<128x128xf32>
    %6 = arith.truncf %5 : vector<128x128xf32> to vector<128x128xbf16>
    %c0_5 = arith.constant 0 : index
    %c0_6 = arith.constant 0 : index
    %7 = vector.load %arg4[%c0_5, %c0_6] : memref<128x128xbf16, #tpu.memory_space<vmem>>, vector<128x128xbf16>
    tpu.vector_store %arg4[%c0_5, %c0_6], %6 {strides = array<i32>} : memref<128x128xbf16, #tpu.memory_space<vmem>>, vector<128x128xbf16>,
    return
  }
  func.func @transform_0(%arg0: i32) -> (i32, i32) {
    %c0_i32 = arith.constant 0 : i32
    %c0_i32_0 = arith.constant 0 : i32
    return %arg0, %c0_i32 : i32, i32
  }
  func.func @transform_1(%arg0: i32) -> (i32, i32) {
    %c0_i32 = arith.constant 0 : i32
    %c0_i32_0 = arith.constant 0 : i32
    %c0_i32_1 = arith.constant 0 : i32
    return %c0_i32, %c0_i32_0 : i32, i32
  }
  func.func @transform_2(%arg0: i32) -> (i32, i32) {
    %c0_i32 = arith.constant 0 : i32
    %c0_i32_0 = arith.constant 0 : i32
    %c0_i32_1 = arith.constant 0 : i32
    return %c0_i32, %c0_i32_0 : i32, i32
  }
  func.func @transform_3(%arg0: i32) -> (i32, i32) {
    %c0_i32 = arith.constant 0 : i32
    %c0_i32_0 = arith.constant 0 : i32
    return %arg0, %c0_i32 : i32, i32
  }
}

module attributes {stable_mosaic.version = 11 : i64} {
  func.func @_aggregate_kernel(%arg0: i32, %arg1: i32, %arg2: memref<128x128xbf16, #tpu.memory_space<vmem>>, %arg3: memref<128x128xbf16, #tpu.memory_space<vmem>>, %arg4: memref<128x128xf32, #tpu.memory_space<vmem>>, %arg5: memref<1x2x128xf32, #tpu.memory_space<vmem>>, %arg6: memref<128x128xf32, #tpu.memory_space<vmem>>) attributes {dimension_semantics = [#tpu.dimension_semantics<parallel>, #tpu.dimension_semantics<arbitrary>], iteration_bounds = array<i64: 1, 1>, scalar_prefetch = 0 : i64, scratch_operands = 1 : i64, tpu.core_type = #tpu.core_type<tc>, window_params = [{transform_indices = @transform_0, window_bounds = array<i64: 128, 128>}, {transform_indices = @transform_1, window_bounds = array<i64: 128, 128>}, {transform_indices = @transform_2, window_bounds = array<i64: 128, 128>}, {transform_indices = @transform_3, window_bounds = array<i64: 1, 2, 128>}]} {
    %c0_i32 = arith.constant 0 : i32
    %0 = arith.cmpi eq, %arg1, %c0_i32 : i32
    %1 = arith.extui %0 : i1 to i32
    %c0_i32_0 = arith.constant 0 : i32
    %2 = arith.cmpi ne, %1, %c0_i32_0 : i32
    scf.if %2 {
      %cst_10 = arith.constant 0.000000e+00 : f32
      %12 = vector.broadcast %cst_10 : f32 to vector<128x128xf32>
      %c0_11 = arith.constant 0 : index
      %c0_12 = arith.constant 0 : index
      %13 = vector.load %arg6[%c0_11, %c0_12] : memref<128x128xf32, #tpu.memory_space<vmem>>, vector<128x128xf32>
      tpu.vector_store %arg6[%c0_11, %c0_12], %12 {strides = array<i32>} : memref<128x128xf32, #tpu.memory_space<vmem>>, vector<128x128xf32>,
    } else {
    }
    %c0 = arith.constant 0 : index
    %c0_1 = arith.constant 0 : index
    %3 = vector.load %arg6[%c0, %c0_1] : memref<128x128xf32, #tpu.memory_space<vmem>>, vector<128x128xf32>
    %c0_2 = arith.constant 0 : index
    %c0_3 = arith.constant 0 : index
    %4 = vector.load %arg2[%c0_2, %c0_3] : memref<128x128xbf16, #tpu.memory_space<vmem>>, vector<128x128xbf16>
    %c0_4 = arith.constant 0 : index
    %c0_5 = arith.constant 0 : index
    %5 = vector.load %arg3[%c0_4, %c0_5] : memref<128x128xbf16, #tpu.memory_space<vmem>>, vector<128x128xbf16>
    %cst = arith.constant dense<0.000000e+00> : vector<128x128xf32>
    %6 = tpu.matmul %4, %5, %cst {dimension_numbers = #tpu.dot_dimension_numbers<[1], [0], [0], [1], [0, 0, 1, 1], [], []>} : vector<128x128xbf16>, vector<128x128xbf16>, vector<128x128xf32> -> vector<128x128xf32>
    %7 = arith.addf %3, %6 : vector<128x128xf32>
    %c0_6 = arith.constant 0 : index
    %c0_7 = arith.constant 0 : index
    %8 = vector.load %arg6[%c0_6, %c0_7] : memref<128x128xf32, #tpu.memory_space<vmem>>, vector<128x128xf32>
    tpu.vector_store %arg6[%c0_6, %c0_7], %7 {strides = array<i32>} : memref<128x128xf32, #tpu.memory_space<vmem>>, vector<128x128xf32>,
    %c0_i32_8 = arith.constant 0 : i32
    %9 = arith.cmpi eq, %arg1, %c0_i32_8 : i32
    %10 = arith.extui %9 : i1 to i32
    %c0_i32_9 = arith.constant 0 : i32
    %11 = arith.cmpi ne, %10, %c0_i32_9 : i32
    scf.if %11 {
      %c0_10 = arith.constant 0 : index
      %c0_11 = arith.constant 0 : index
      %12 = vector.load %arg6[%c0_10, %c0_11] : memref<128x128xf32, #tpu.memory_space<vmem>>, vector<128x128xf32>
      %c0_12 = arith.constant 0 : index
      %c0_13 = arith.constant 0 : index
      %13 = vector.load %arg4[%c0_12, %c0_13] : memref<128x128xf32, #tpu.memory_space<vmem>>, vector<128x128xf32>
      tpu.vector_store %arg4[%c0_12, %c0_13], %12 {strides = array<i32>} : memref<128x128xf32, #tpu.memory_space<vmem>>, vector<128x128xf32>,
      %cst_14 = arith.constant dense<0.000000e+00> : vector<128xf32>
      %14 = vector.multi_reduction <add>, %12, %cst_14 [0] : vector<128x128xf32> to vector<128xf32>
      %15 = vector.shape_cast %14 : vector<128xf32> to vector<1x128xf32>
      %16 = arith.mulf %12, %12 : vector<128x128xf32>
      %cst_15 = arith.constant dense<0.000000e+00> : vector<128xf32>
      %17 = vector.multi_reduction <add>, %16, %cst_15 [0] : vector<128x128xf32> to vector<128xf32>
      %18 = vector.shape_cast %17 : vector<128xf32> to vector<1x128xf32>
      %19 = tpu.concatenate %15, %18 in 0 : vector<1x128xf32>, vector<1x128xf32> -> vector<2x128xf32>
      %20 = vector.shape_cast %19 : vector<2x128xf32> to vector<1x2x128xf32>
      %c0_16 = arith.constant 0 : index
      %c0_17 = arith.constant 0 : index
      %c0_18 = arith.constant 0 : index
      %21 = vector.load %arg5[%c0_16, %c0_17, %c0_18] : memref<1x2x128xf32, #tpu.memory_space<vmem>>, vector<1x2x128xf32>
      tpu.vector_store %arg5[%c0_16, %c0_17, %c0_18], %20 {strides = array<i32>} : memref<1x2x128xf32, #tpu.memory_space<vmem>>, vector<1x2x128xf32>,
    } else {
    }
    return
  }
  func.func @transform_0(%arg0: i32, %arg1: i32) -> (i32, i32) {
    %c0_i32 = arith.constant 0 : i32
    return %arg0, %arg1 : i32, i32
  }
  func.func @transform_1(%arg0: i32, %arg1: i32) -> (i32, i32) {
    %c0_i32 = arith.constant 0 : i32
    %c0_i32_0 = arith.constant 0 : i32
    return %arg1, %c0_i32 : i32, i32
  }
  func.func @transform_2(%arg0: i32, %arg1: i32) -> (i32, i32) {
    %c0_i32 = arith.constant 0 : i32
    %c0_i32_0 = arith.constant 0 : i32
    return %arg0, %c0_i32 : i32, i32
  }
  func.func @transform_3(%arg0: i32, %arg1: i32) -> (i32, i32, i32) {
    %c0_i32 = arith.constant 0 : i32
    %c0_i32_0 = arith.constant 0 : i32
    %c0_i32_1 = arith.constant 0 : i32
    return %arg0, %c0_i32, %c0_i32_0 : i32, i32, i32
  }
}

module attributes {stable_mosaic.version = 11 : i64} {
  func.func @_bn_apply_kernel(%arg0: i32, %arg1: memref<128x128xf32, #tpu.memory_space<vmem>>, %arg2: memref<128x128xf32, #tpu.memory_space<vmem>>, %arg3: memref<2x128xf32, #tpu.memory_space<vmem>>, %arg4: memref<128x128xf32, #tpu.memory_space<vmem>>) attributes {dimension_semantics = [#tpu.dimension_semantics<parallel>], iteration_bounds = array<i64: 1>, scalar_prefetch = 0 : i64, scratch_operands = 0 : i64, tpu.core_type = #tpu.core_type<tc>, window_params = [{transform_indices = @transform_0, window_bounds = array<i64: 128, 128>}, {transform_indices = @transform_1, window_bounds = array<i64: 128, 128>}, {pipeline_mode = #tpu.pipeline_mode<synchronous>, transform_indices = @transform_2, window_bounds = array<i64: 2, 128>}, {transform_indices = @transform_3, window_bounds = array<i64: 128, 128>}]} {
    %c0 = arith.constant 0 : index
    %c0_0 = arith.constant 0 : index
    %0 = vector.load %arg1[%c0, %c0_0] : memref<128x128xf32, #tpu.memory_space<vmem>>, vector<128x128xf32>
    %c0_1 = arith.constant 0 : index
    %c0_2 = arith.constant 0 : index
    %1 = vector.load %arg3[%c0_1, %c0_2] : memref<2x128xf32, #tpu.memory_space<vmem>>, vector<1x128xf32>
    %c1 = arith.constant 1 : index
    %c0_3 = arith.constant 0 : index
    %2 = vector.load %arg3[%c1, %c0_3] : memref<2x128xf32, #tpu.memory_space<vmem>>, vector<1x128xf32>
    %3 = vector.broadcast %1 : vector<1x128xf32> to vector<128x128xf32>
    %4 = arith.mulf %0, %3 : vector<128x128xf32>
    %5 = vector.broadcast %2 : vector<1x128xf32> to vector<128x128xf32>
    %6 = arith.addf %4, %5 : vector<128x128xf32>
    %cst = arith.constant 0.000000e+00 : f32
    %7 = vector.broadcast %cst : f32 to vector<128x128xf32>
    %8 = arith.maximumf %6, %7 : vector<128x128xf32>
    %c0_4 = arith.constant 0 : index
    %c0_5 = arith.constant 0 : index
    %9 = vector.load %arg2[%c0_4, %c0_5] : memref<128x128xf32, #tpu.memory_space<vmem>>, vector<128x128xf32>
    %10 = arith.addf %8, %9 : vector<128x128xf32>
    %c0_6 = arith.constant 0 : index
    %c0_7 = arith.constant 0 : index
    %11 = vector.load %arg4[%c0_6, %c0_7] : memref<128x128xf32, #tpu.memory_space<vmem>>, vector<128x128xf32>
    tpu.vector_store %arg4[%c0_6, %c0_7], %10 {strides = array<i32>} : memref<128x128xf32, #tpu.memory_space<vmem>>, vector<128x128xf32>,
    return
  }
  func.func @transform_0(%arg0: i32) -> (i32, i32) {
    %c0_i32 = arith.constant 0 : i32
    %c0_i32_0 = arith.constant 0 : i32
    return %arg0, %c0_i32 : i32, i32
  }
  func.func @transform_1(%arg0: i32) -> (i32, i32) {
    %c0_i32 = arith.constant 0 : i32
    %c0_i32_0 = arith.constant 0 : i32
    return %arg0, %c0_i32 : i32, i32
  }
  func.func @transform_2(%arg0: i32) -> (i32, i32) {
    %c0_i32 = arith.constant 0 : i32
    %c0_i32_0 = arith.constant 0 : i32
    %c0_i32_1 = arith.constant 0 : i32
    return %c0_i32, %c0_i32_0 : i32, i32
  }
  func.func @transform_3(%arg0: i32) -> (i32, i32) {
    %c0_i32 = arith.constant 0 : i32
    %c0_i32_0 = arith.constant 0 : i32
    return %arg0, %c0_i32 : i32, i32
  }
}

</mosaic_0001>

<llo_original>
// kernel: _gcn_forward.5
$region0: #{_gcn_forward.5}
  #allocation0 [shape = 'u32[]', space=smem, size = 0x4, offset = 0x4, fixed_abs, tag = 'smem constant byte address 0x4 - core index']
  #allocation1 [shape = 'u32[72,128]{1,0:T(1,128)}', space=vmem, size = 0x9000, scoped, tag = 'internal scratch']
  %s0 = inlined_call_operand.vmem [shape: f32[128,128], index: 0, kind: input, shape index: {}]
  %s1 = inlined_call_operand.vmem [shape: f32[128,128], index: 1, kind: input, shape index: {}]
  %s2 = inlined_call_operand.vmem [shape: f32[2,128], index: 2, kind: input, shape index: {}]
  %s3 = inlined_call_operand.vmem [shape: f32[128,128], index: 3, kind: output, shape index: {}]
  %s4 = sld [smem:[#allocation0]]
  $region22: #{_gcn_forward.5} parent=0
    _
  %s6 = ssub.s32 1, %s4
  %s7 = scalar_select 0, %s6, %s4
  // Predicated region
  $region2: #{_gcn_forward.5} parent=0 // pred_check
    _
  $region3: #{_gcn_forward.5} parent=0 // pred_check_branch
    %9 = sbr.rel (0) target = $region5
  $region4: #{_gcn_forward.5} parent=0 // pred_region
    _
  $region5: #{_gcn_forward.5} parent=0 // pred_fallthru
    _
  // Predicated region
  $region6: #{_gcn_forward.5} parent=0 // pred_check
    _
  $region7: #{_gcn_forward.5} parent=0 // pred_check_branch
    %11 = sbr.rel (0) target = $region9
  $region8: #{_gcn_forward.5} parent=0 // pred_region
    _
  $region9: #{_gcn_forward.5} parent=0 // pred_fallthru
    _
  // Predicated region
  $region10: #{_gcn_forward.5} parent=0 // pred_check
    _
  $region11: #{_gcn_forward.5} parent=0 // pred_check_branch
    %13 = sbr.rel (0) target = $region13
  $region12: #{_gcn_forward.5} parent=0 // pred_region
    _
  $region13: #{_gcn_forward.5} parent=0 // pred_fallthru
    _
  %v14 = vld [vmem:[%s0] sm:$0xff]
  %v15 = vld [vmem:[%s0 + $0x8] sm:$0xff]
  %v16 = vld [vmem:[%s0 + $0x10] sm:$0xff]
  %v17 = vld [vmem:[%s0 + $0x18] sm:$0xff]
  %v18 = vld [vmem:[%s0 + $0x20] sm:$0xff]
  %v19 = vld [vmem:[%s0 + $0x28] sm:$0xff]
  %v20 = vld [vmem:[%s0 + $0x30] sm:$0xff]
  %v21 = vld [vmem:[%s0 + $0x38] sm:$0xff]
  %v22 = vld [vmem:[%s0 + $0x40] sm:$0xff]
  %v23 = vld [vmem:[%s0 + $0x48] sm:$0xff]
  %v24 = vld [vmem:[%s0 + $0x50] sm:$0xff]
  %v25 = vld [vmem:[%s0 + $0x58] sm:$0xff]
  %v26 = vld [vmem:[%s0 + $0x60] sm:$0xff]
  %v27 = vld [vmem:[%s0 + $0x68] sm:$0xff]
  %v28 = vld [vmem:[%s0 + $0x70] sm:$0xff]
  %v29 = vld [vmem:[%s0 + $0x78] sm:$0xff]
  %v30 = vld [vmem:[%s2] sm:$0x1]
  %v31 = vld [vmem:[%s2 + $0x1] sm:$0x1]
  %v32 = vperm.slane %v30, 0
  %v33 = vmul.f32 %v14, %v32
  %v34 = vmul.f32 %v15, %v32
  %v35 = vmul.f32 %v16, %v32
  %v36 = vmul.f32 %v17, %v32
  %v37 = vmul.f32 %v18, %v32
  %v38 = vmul.f32 %v19, %v32
  %v39 = vmul.f32 %v20, %v32
  %v40 = vmul.f32 %v21, %v32
  %v41 = vmul.f32 %v22, %v32
  %v42 = vmul.f32 %v23, %v32
  %v43 = vmul.f32 %v24, %v32
  %v44 = vmul.f32 %v25, %v32
  %v45 = vmul.f32 %v26, %v32
  %v46 = vmul.f32 %v27, %v32
  %v47 = vmul.f32 %v28, %v32
  %v48 = vmul.f32 %v29, %v32
  %v49 = vperm.slane %v31, 0
  %v50 = vadd.f32 %v33, %v49
  %v51 = vadd.f32 %v34, %v49
  %v52 = vadd.f32 %v35, %v49
  %v53 = vadd.f32 %v36, %v49
  %v54 = vadd.f32 %v37, %v49
  %v55 = vadd.f32 %v38, %v49
  %v56 = vadd.f32 %v39, %v49
  %v57 = vadd.f32 %v40, %v49
  %v58 = vadd.f32 %v41, %v49
  %v59 = vadd.f32 %v42, %v49
  %v60 = vadd.f32 %v43, %v49
  %v61 = vadd.f32 %v44, %v49
  %v62 = vadd.f32 %v45, %v49
  %v63 = vadd.f32 %v46, %v49
  %v64 = vadd.f32 %v47, %v49
  %v65 = vadd.f32 %v48, %v49
  %v66 = vmax.f32 %v50, 0.0
  %v67 = vmax.f32 %v51, 0.0
  %v68 = vmax.f32 %v52, 0.0
  %v69 = vmax.f32 %v53, 0.0
  %v70 = vmax.f32 %v54, 0.0
  %v71 = vmax.f32 %v55, 0.0
  %v72 = vmax.f32 %v56, 0.0
  %v73 = vmax.f32 %v57, 0.0
  %v74 = vmax.f32 %v58, 0.0
  %v75 = vmax.f32 %v59, 0.0
  %v76 = vmax.f32 %v60, 0.0
  %v77 = vmax.f32 %v61, 0.0
  %v78 = vmax.f32 %v62, 0.0
  %v79 = vmax.f32 %v63, 0.0
  %v80 = vmax.f32 %v64, 0.0
  %v81 = vmax.f32 %v65, 0.0
  %v82 = vld [vmem:[%s1] sm:$0xff]
  %v83 = vld [vmem:[%s1 + $0x8] sm:$0xff]
  %v84 = vld [vmem:[%s1 + $0x10] sm:$0xff]
  %v85 = vld [vmem:[%s1 + $0x18] sm:$0xff]
  %v86 = vld [vmem:[%s1 + $0x20] sm:$0xff]
  %v87 = vld [vmem:[%s1 + $0x28] sm:$0xff]
  %v88 = vld [vmem:[%s1 + $0x30] sm:$0xff]
  %v89 = vld [vmem:[%s1 + $0x38] sm:$0xff]
  %v90 = vld [vmem:[%s1 + $0x40] sm:$0xff]
  %v91 = vld [vmem:[%s1 + $0x48] sm:$0xff]
  %v92 = vld [vmem:[%s1 + $0x50] sm:$0xff]
  %v93 = vld [vmem:[%s1 + $0x58] sm:$0xff]
  %v94 = vld [vmem:[%s1 + $0x60] sm:$0xff]
  %v95 = vld [vmem:[%s1 + $0x68] sm:$0xff]
  %v96 = vld [vmem:[%s1 + $0x70] sm:$0xff]
  %v97 = vld [vmem:[%s1 + $0x78] sm:$0xff]
  %v98 = vadd.f32 %v66, %v82
  %v99 = vadd.f32 %v67, %v83
  %v100 = vadd.f32 %v68, %v84
  %v101 = vadd.f32 %v69, %v85
  %v102 = vadd.f32 %v70, %v86
  %v103 = vadd.f32 %v71, %v87
  %v104 = vadd.f32 %v72, %v88
  %v105 = vadd.f32 %v73, %v89
  %v106 = vadd.f32 %v74, %v90
  %v107 = vadd.f32 %v75, %v91
  %v108 = vadd.f32 %v76, %v92
  %v109 = vadd.f32 %v77, %v93
  %v110 = vadd.f32 %v78, %v94
  %v111 = vadd.f32 %v79, %v95
  %v112 = vadd.f32 %v80, %v96
  %v113 = vadd.f32 %v81, %v97
  %114 = vst [vmem:[%s3] sm:$0xff] %v98
  %115 = vst [vmem:[%s3 + $0x8] sm:$0xff] %v99
  %116 = vst [vmem:[%s3 + $0x10] sm:$0xff] %v100
  %117 = vst [vmem:[%s3 + $0x18] sm:$0xff] %v101
  %118 = vst [vmem:[%s3 + $0x20] sm:$0xff] %v102
  %119 = vst [vmem:[%s3 + $0x28] sm:$0xff] %v103
  %120 = vst [vmem:[%s3 + $0x30] sm:$0xff] %v104
  %121 = vst [vmem:[%s3 + $0x38] sm:$0xff] %v105
  %122 = vst [vmem:[%s3 + $0x40] sm:$0xff] %v106
  %123 = vst [vmem:[%s3 + $0x48] sm:$0xff] %v107
  %124 = vst [vmem:[%s3 + $0x50] sm:$0xff] %v108
  %125 = vst [vmem:[%s3 + $0x58] sm:$0xff] %v109
  %126 = vst [vmem:[%s3 + $0x60] sm:$0xff] %v110
  %127 = vst [vmem:[%s3 + $0x68] sm:$0xff] %v111
  %128 = vst [vmem:[%s3 + $0x70] sm:$0xff] %v112
  %129 = vst [vmem:[%s3 + $0x78] sm:$0xff] %v113
  // Predicated region
  $region14: #{_gcn_forward.5} parent=0 // pred_check
    _
  $region15: #{_gcn_forward.5} parent=0 // pred_check_branch
    %131 = sbr.rel (0) target = $region17
  $region16: #{_gcn_forward.5} parent=0 // pred_region
    _
  $region17: #{_gcn_forward.5} parent=0 // pred_fallthru
    _
  // Predicated region
  $region18: #{_gcn_forward.5} parent=0 // pred_check
    _
  $region19: #{_gcn_forward.5} parent=0 // pred_check_branch
    %133 = sbr.rel (0) target = $region21
  $region20: #{_gcn_forward.5} parent=0 // pred_region
    _
  $region21: #{_gcn_forward.5} parent=0 // pred_fallthru
    _

// kernel: _gcn_forward.3
$region0: #{_gcn_forward.3}
  #allocation0 [shape = 'u32[]', space=smem, size = 0x4, offset = 0x4, fixed_abs, tag = 'smem constant byte address 0x4 - core index']
  #allocation1 [shape = 'u32[72,128]{1,0:T(1,128)}', space=vmem, size = 0x9000, scoped, tag = 'internal scratch']
  %s0 = inlined_call_operand.vmem [shape: bf16[128,128], index: 0, kind: input, shape index: {}]
  %s1 = inlined_call_operand.vmem [shape: bf16[128,128], index: 1, kind: input, shape index: {}]
  %s2 = inlined_call_operand.vmem [shape: f32[1,128], index: 2, kind: input, shape index: {}]
  %s3 = inlined_call_operand.vmem [shape: bf16[128,128], index: 3, kind: output, shape index: {}]
  %s4 = sld [smem:[#allocation0]]
  $region22: #{_gcn_forward.3} parent=0
    _
  %s6 = ssub.s32 1, %s4
  %s7 = scalar_select 0, %s6, %s4
  // Predicated region
  $region2: #{_gcn_forward.3} parent=0 // pred_check
    _
  $region3: #{_gcn_forward.3} parent=0 // pred_check_branch
    %9 = sbr.rel (0) target = $region5
  $region4: #{_gcn_forward.3} parent=0 // pred_region
    _
  $region5: #{_gcn_forward.3} parent=0 // pred_fallthru
    _
  // Predicated region
  $region6: #{_gcn_forward.3} parent=0 // pred_check
    _
  $region7: #{_gcn_forward.3} parent=0 // pred_check_branch
    %11 = sbr.rel (0) target = $region9
  $region8: #{_gcn_forward.3} parent=0 // pred_region
    _
  $region9: #{_gcn_forward.3} parent=0 // pred_fallthru
    _
  // Predicated region
  $region10: #{_gcn_forward.3} parent=0 // pred_check
    _
  $region11: #{_gcn_forward.3} parent=0 // pred_check_branch
    %13 = sbr.rel (0) target = $region13
  $region12: #{_gcn_forward.3} parent=0 // pred_region
    _
  $region13: #{_gcn_forward.3} parent=0 // pred_fallthru
    _
  %v14 = vld [vmem:[%s0] sm:$0xf]
  %v15 = vld [vmem:[%s0 + $0x4] sm:$0xf]
  %v16 = vld [vmem:[%s0 + $0x8] sm:$0xf]
  %v17 = vld [vmem:[%s0 + $0xc] sm:$0xf]
  %v18 = vld [vmem:[%s0 + $0x10] sm:$0xf]
  %v19 = vld [vmem:[%s0 + $0x14] sm:$0xf]
  %v20 = vld [vmem:[%s0 + $0x18] sm:$0xf]
  %v21 = vld [vmem:[%s0 + $0x1c] sm:$0xf]
  %v22 = vld [vmem:[%s0 + $0x20] sm:$0xf]
  %v23 = vld [vmem:[%s0 + $0x24] sm:$0xf]
  %v24 = vld [vmem:[%s0 + $0x28] sm:$0xf]
  %v25 = vld [vmem:[%s0 + $0x2c] sm:$0xf]
  %v26 = vld [vmem:[%s0 + $0x30] sm:$0xf]
  %v27 = vld [vmem:[%s0 + $0x34] sm:$0xf]
  %v28 = vld [vmem:[%s0 + $0x38] sm:$0xf]
  %v29 = vld [vmem:[%s0 + $0x3c] sm:$0xf]
  %v30 = vld [vmem:[%s1] sm:$0xf]
  %v31 = vld [vmem:[%s1 + $0x4] sm:$0xf]
  %v32 = vld [vmem:[%s1 + $0x8] sm:$0xf]
  %v33 = vld [vmem:[%s1 + $0xc] sm:$0xf]
  %v34 = vld [vmem:[%s1 + $0x10] sm:$0xf]
  %v35 = vld [vmem:[%s1 + $0x14] sm:$0xf]
  %v36 = vld [vmem:[%s1 + $0x18] sm:$0xf]
  %v37 = vld [vmem:[%s1 + $0x1c] sm:$0xf]
  %v38 = vld [vmem:[%s1 + $0x20] sm:$0xf]
  %v39 = vld [vmem:[%s1 + $0x24] sm:$0xf]
  %v40 = vld [vmem:[%s1 + $0x28] sm:$0xf]
  %v41 = vld [vmem:[%s1 + $0x2c] sm:$0xf]
  %v42 = vld [vmem:[%s1 + $0x30] sm:$0xf]
  %v43 = vld [vmem:[%s1 + $0x34] sm:$0xf]
  %v44 = vld [vmem:[%s1 + $0x38] sm:$0xf]
  %v45 = vld [vmem:[%s1 + $0x3c] sm:$0xf]
  %v46 = vld [vmem:[%s2] sm:$0x1]
  %v48 = vperm.slane %v46, 0
  %v66 = vunpack.c.l.b16 %v14
  %v67 = vunpack.c.l.b16 %v15
  %v68 = vunpack.c.l.b16 %v16
  %v69 = vunpack.c.l.b16 %v17
  %v70 = vunpack.c.l.b16 %v18
  %v71 = vunpack.c.l.b16 %v19
  %v72 = vunpack.c.l.b16 %v20
  %v73 = vunpack.c.l.b16 %v21
  %v74 = vunpack.c.l.b16 %v22
  %v75 = vunpack.c.l.b16 %v23
  %v76 = vunpack.c.l.b16 %v24
  %v77 = vunpack.c.l.b16 %v25
  %v78 = vunpack.c.l.b16 %v26
  %v79 = vunpack.c.l.b16 %v27
  %v80 = vunpack.c.l.b16 %v28
  %v81 = vunpack.c.l.b16 %v29
  %v82 = vpack.c.b16 %v67, %v66
  %v83 = vpack.c.b16 %v69, %v68
  %v84 = vpack.c.b16 %v71, %v70
  %v85 = vpack.c.b16 %v73, %v72
  %v86 = vpack.c.b16 %v75, %v74
  %v87 = vpack.c.b16 %v77, %v76
  %v88 = vpack.c.b16 %v79, %v78
  %v89 = vpack.c.b16 %v81, %v80
  %v114 = vunpack.c.l.b16 %v30
  %v115 = vunpack.c.l.b16 %v31
  %v116 = vunpack.c.l.b16 %v32
  %v117 = vunpack.c.l.b16 %v33
  %v118 = vunpack.c.l.b16 %v34
  %v119 = vunpack.c.l.b16 %v35
  %v120 = vunpack.c.l.b16 %v36
  %v121 = vunpack.c.l.b16 %v37
  %v122 = vunpack.c.l.b16 %v38
  %v123 = vunpack.c.l.b16 %v39
  %v124 = vunpack.c.l.b16 %v40
  %v125 = vunpack.c.l.b16 %v41
  %v126 = vunpack.c.l.b16 %v42
  %v127 = vunpack.c.l.b16 %v43
  %v128 = vunpack.c.l.b16 %v44
  %v129 = vunpack.c.l.b16 %v45
  %v130 = vpack.c.b16 %v115, %v114
  %v131 = vpack.c.b16 %v117, %v116
  %v132 = vpack.c.b16 %v119, %v118
  %v133 = vpack.c.b16 %v121, %v120
  %v134 = vpack.c.b16 %v123, %v122
  %v135 = vpack.c.b16 %v125, %v124
  %v136 = vpack.c.b16 %v127, %v126
  %v137 = vpack.c.b16 %v129, %v128
  %146 = vmatpush.bf16.msra.mxu0 %v137
  %147 = vmatpush.bf16.msra.mxu0 %v136
  %148 = vmatpush.bf16.msra.mxu0 %v135
  %149 = vmatpush.bf16.msra.mxu0 %v134
  %150 = vmatpush.bf16.msra.mxu0 %v133
  %151 = vmatpush.bf16.msra.mxu0 %v132
  %152 = vmatpush.bf16.msra.mxu0 %v131
  %153 = vmatpush.bf16.msra.mxu0 %v130
  %154 = vmatmul.bf16.gmra.mxu0 %v82
  %v155 = vpop.f32.mrf.mxu0
  %v156 = vadd.f32 %v48, %v155
  %v157 = vpop.f32.mrf.mxu0
  %v158 = vadd.f32 %v48, %v157
  %159 = vmatmul.bf16.gmra.mxu0 %v83
  %v160 = vpop.f32.mrf.mxu0
  %v161 = vadd.f32 %v48, %v160
  %v162 = vpop.f32.mrf.mxu0
  %v163 = vadd.f32 %v48, %v162
  %164 = vmatmul.bf16.gmra.mxu0 %v84
  %v165 = vpop.f32.mrf.mxu0
  %v166 = vadd.f32 %v48, %v165
  %v167 = vpop.f32.mrf.mxu0
  %v168 = vadd.f32 %v48, %v167
  %169 = vmatmul.bf16.gmra.mxu0 %v85
  %v170 = vpop.f32.mrf.mxu0
  %v171 = vadd.f32 %v48, %v170
  %v172 = vpop.f32.mrf.mxu0
  %v173 = vadd.f32 %v48, %v172
  %174 = vmatmul.bf16.gmra.mxu0 %v86
  %v175 = vpop.f32.mrf.mxu0
  %v176 = vadd.f32 %v48, %v175
  %v177 = vpop.f32.mrf.mxu0
  %v178 = vadd.f32 %v48, %v177
  %179 = vmatmul.bf16.gmra.mxu0 %v87
  %v180 = vpop.f32.mrf.mxu0
  %v181 = vadd.f32 %v48, %v180
  %v182 = vpop.f32.mrf.mxu0
  %v183 = vadd.f32 %v48, %v182
  %184 = vmatmul.bf16.gmra.mxu0 %v88
  %v185 = vpop.f32.mrf.mxu0
  %v186 = vadd.f32 %v48, %v185
  %v187 = vpop.f32.mrf.mxu0
  %v188 = vadd.f32 %v48, %v187
  %189 = vmatmul.bf16.gmra.mxu0 %v89
  %v190 = vpop.f32.mrf.mxu0
  %v191 = vadd.f32 %v48, %v190
  %v192 = vpop.f32.mrf.mxu0
  %v193 = vadd.f32 %v48, %v192
  %194 = vdwg.mxu0
  %v195 = vpack.c.bf16 %v156, %v156
  %v196 = vpack.c.bf16 %v158, %v158
  %v197 = vpack.c.bf16 %v161, %v161
  %v198 = vpack.c.bf16 %v163, %v163
  %v199 = vpack.c.bf16 %v166, %v166
  %v200 = vpack.c.bf16 %v168, %v168
  %v201 = vpack.c.bf16 %v171, %v171
  %v202 = vpack.c.bf16 %v173, %v173
  %v203 = vpack.c.bf16 %v176, %v176
  %v204 = vpack.c.bf16 %v178, %v178
  %v205 = vpack.c.bf16 %v181, %v181
  %v206 = vpack.c.bf16 %v183, %v183
  %v207 = vpack.c.bf16 %v186, %v186
  %v208 = vpack.c.bf16 %v188, %v188
  %v209 = vpack.c.bf16 %v191, %v191
  %v210 = vpack.c.bf16 %v193, %v193
  %211 = vst [vmem:[%s3] sm:$0xf] %v195
  %212 = vst [vmem:[%s3 + $0x4] sm:$0xf] %v196
  %213 = vst [vmem:[%s3 + $0x8] sm:$0xf] %v197
  %214 = vst [vmem:[%s3 + $0xc] sm:$0xf] %v198
  %215 = vst [vmem:[%s3 + $0x10] sm:$0xf] %v199
  %216 = vst [vmem:[%s3 + $0x14] sm:$0xf] %v200
  %217 = vst [vmem:[%s3 + $0x18] sm:$0xf] %v201
  %218 = vst [vmem:[%s3 + $0x1c] sm:$0xf] %v202
  %219 = vst [vmem:[%s3 + $0x20] sm:$0xf] %v203
  %220 = vst [vmem:[%s3 + $0x24] sm:$0xf] %v204
  %221 = vst [vmem:[%s3 + $0x28] sm:$0xf] %v205
  %222 = vst [vmem:[%s3 + $0x2c] sm:$0xf] %v206
  %223 = vst [vmem:[%s3 + $0x30] sm:$0xf] %v207
  %224 = vst [vmem:[%s3 + $0x34] sm:$0xf] %v208
  %225 = vst [vmem:[%s3 + $0x38] sm:$0xf] %v209
  %226 = vst [vmem:[%s3 + $0x3c] sm:$0xf] %v210
  // Predicated region
  $region14: #{_gcn_forward.3} parent=0 // pred_check
    _
  $region15: #{_gcn_forward.3} parent=0 // pred_check_branch
    %228 = sbr.rel (0) target = $region17
  $region16: #{_gcn_forward.3} parent=0 // pred_region
    _
  $region17: #{_gcn_forward.3} parent=0 // pred_fallthru
    _
  // Predicated region
  $region18: #{_gcn_forward.3} parent=0 // pred_check
    _
  $region19: #{_gcn_forward.3} parent=0 // pred_check_branch
    %230 = sbr.rel (0) target = $region21
  $region20: #{_gcn_forward.3} parent=0 // pred_region
    _
  $region21: #{_gcn_forward.3} parent=0 // pred_fallthru
    _

// kernel: _gcn_forward.4
$region0: #{_gcn_forward.4}
  #allocation0 [shape = 'u32[]', space=smem, size = 0x4, offset = 0x4, fixed_abs, tag = 'smem constant byte address 0x4 - core index']
  #allocation1 [shape = 'u32[72,128]{1,0:T(1,128)}', space=vmem, size = 0x9000, scoped, tag = 'internal scratch']
  #allocation2 [shape = 'f32[128,128]{1,0:T(8,128)}', space=vmem, size = 0x10000, scoped, tag = 'scratch operand']
  %s0 = inlined_call_operand.vmem [shape: bf16[128,128], index: 0, kind: input, shape index: {}]
  %s1 = inlined_call_operand.vmem [shape: bf16[128,128], index: 1, kind: input, shape index: {}]
  %s2 = inlined_call_operand.vmem [shape: f32[128,128], index: 2, kind: output, shape index: {0}]
  %s3 = inlined_call_operand.vmem [shape: f32[1,2,128], index: 3, kind: output, shape index: {1}]
  %4 = xla_tuple %s2, %s3
  %s5 = sld [smem:[#allocation0]]
  $region34: #{_gcn_forward.4} parent=0
    _
  %s7 = ssub.s32 1, %s5
  %s8 = scalar_select 0, %s7, %s5
  // Predicated region
  $region2: #{_gcn_forward.4} parent=0 // pred_check
    _
  $region3: #{_gcn_forward.4} parent=0 // pred_check_branch
    %10 = sbr.rel (0) target = $region5
  $region4: #{_gcn_forward.4} parent=0 // pred_region
    _
  $region5: #{_gcn_forward.4} parent=0 // pred_fallthru
    _
  // Predicated region
  $region6: #{_gcn_forward.4} parent=0 // pred_check
    _
  $region7: #{_gcn_forward.4} parent=0 // pred_check_branch
    %12 = sbr.rel (0) target = $region9
  $region8: #{_gcn_forward.4} parent=0 // pred_region
    _
  $region9: #{_gcn_forward.4} parent=0 // pred_fallthru
    _
  %p13 = scmp.eq.s32.totalorder 0, 0
  // Predicated region
  $region10: #{_gcn_forward.4} parent=0 // pred_check
    %p14 = pneg %p13
  $region11: #{_gcn_forward.4} parent=0 // pred_check_branch
    %16 = sbr.rel (%p14) target = $region13
  $region12: #{_gcn_forward.4} parent=0 // pred_region
    %17 = vst [vmem:[#allocation2] sm:$0xff] 0.0
    %18 = vst [vmem:[#allocation2 + $0x8] sm:$0xff] 0.0
    %19 = vst [vmem:[#allocation2 + $0x10] sm:$0xff] 0.0
    %20 = vst [vmem:[#allocation2 + $0x18] sm:$0xff] 0.0
    %21 = vst [vmem:[#allocation2 + $0x20] sm:$0xff] 0.0
    %22 = vst [vmem:[#allocation2 + $0x28] sm:$0xff] 0.0
    %23 = vst [vmem:[#allocation2 + $0x30] sm:$0xff] 0.0
    %24 = vst [vmem:[#allocation2 + $0x38] sm:$0xff] 0.0
    %25 = vst [vmem:[#allocation2 + $0x40] sm:$0xff] 0.0
    %26 = vst [vmem:[#allocation2 + $0x48] sm:$0xff] 0.0
    %27 = vst [vmem:[#allocation2 + $0x50] sm:$0xff] 0.0
    %28 = vst [vmem:[#allocation2 + $0x58] sm:$0xff] 0.0
    %29 = vst [vmem:[#allocation2 + $0x60] sm:$0xff] 0.0
    %30 = vst [vmem:[#allocation2 + $0x68] sm:$0xff] 0.0
    %31 = vst [vmem:[#allocation2 + $0x70] sm:$0xff] 0.0
    %32 = vst [vmem:[#allocation2 + $0x78] sm:$0xff] 0.0
  $region13: #{_gcn_forward.4} parent=0 // pred_fallthru
    _
  %v33 = vld [vmem:[#allocation2] sm:$0xff]
  %v34 = vld [vmem:[#allocation2 + $0x8] sm:$0xff]
  %v35 = vld [vmem:[#allocation2 + $0x10] sm:$0xff]
  %v36 = vld [vmem:[#allocation2 + $0x18] sm:$0xff]
  %v37 = vld [vmem:[#allocation2 + $0x20] sm:$0xff]
  %v38 = vld [vmem:[#allocation2 + $0x28] sm:$0xff]
  %v39 = vld [vmem:[#allocation2 + $0x30] sm:$0xff]
  %v40 = vld [vmem:[#allocation2 + $0x38] sm:$0xff]
  %v41 = vld [vmem:[#allocation2 + $0x40] sm:$0xff]
  %v42 = vld [vmem:[#allocation2 + $0x48] sm:$0xff]
  %v43 = vld [vmem:[#allocation2 + $0x50] sm:$0xff]
  %v44 = vld [vmem:[#allocation2 + $0x58] sm:$0xff]
  %v45 = vld [vmem:[#allocation2 + $0x60] sm:$0xff]
  %v46 = vld [vmem:[#allocation2 + $0x68] sm:$0xff]
  %v47 = vld [vmem:[#allocation2 + $0x70] sm:$0xff]
  %v48 = vld [vmem:[#allocation2 + $0x78] sm:$0xff]
  %v49 = vld [vmem:[%s0] sm:$0xf]
  %v50 = vld [vmem:[%s0 + $0x4] sm:$0xf]
  %v51 = vld [vmem:[%s0 + $0x8] sm:$0xf]
  %v52 = vld [vmem:[%s0 + $0xc] sm:$0xf]
  %v53 = vld [vmem:[%s0 + $0x10] sm:$0xf]
  %v54 = vld [vmem:[%s0 + $0x14] sm:$0xf]
  %v55 = vld [vmem:[%s0 + $0x18] sm:$0xf]
  %v56 = vld [vmem:[%s0 + $0x1c] sm:$0xf]
  %v57 = vld [vmem:[%s0 + $0x20] sm:$0xf]
  %v58 = vld [vmem:[%s0 + $0x24] sm:$0xf]
  %v59 = vld [vmem:[%s0 + $0x28] sm:$0xf]
  %v60 = vld [vmem:[%s0 + $0x2c] sm:$0xf]
  %v61 = vld [vmem:[%s0 + $0x30] sm:$0xf]
  %v62 = vld [vmem:[%s0 + $0x34] sm:$0xf]
  %v63 = vld [vmem:[%s0 + $0x38] sm:$0xf]
  %v64 = vld [vmem:[%s0 + $0x3c] sm:$0xf]
  %v65 = vld [vmem:[%s1] sm:$0xf]
  %v66 = vld [vmem:[%s1 + $0x4] sm:$0xf]
  %v67 = vld [vmem:[%s1 + $0x8] sm:$0xf]
  %v68 = vld [vmem:[%s1 + $0xc] sm:$0xf]
  %v69 = vld [vmem:[%s1 + $0x10] sm:$0xf]
  %v70 = vld [vmem:[%s1 + $0x14] sm:$0xf]
  %v71 = vld [vmem:[%s1 + $0x18] sm:$0xf]
  %v72 = vld [vmem:[%s1 + $0x1c] sm:$0xf]
  %v73 = vld [vmem:[%s1 + $0x20] sm:$0xf]
  %v74 = vld [vmem:[%s1 + $0x24] sm:$0xf]
  %v75 = vld [vmem:[%s1 + $0x28] sm:$0xf]
  %v76 = vld [vmem:[%s1 + $0x2c] sm:$0xf]
  %v77 = vld [vmem:[%s1 + $0x30] sm:$0xf]
  %v78 = vld [vmem:[%s1 + $0x34] sm:$0xf]
  %v79 = vld [vmem:[%s1 + $0x38] sm:$0xf]
  %v80 = vld [vmem:[%s1 + $0x3c] sm:$0xf]
  %v97 = vunpack.c.l.b16 %v49
  %v98 = vunpack.c.l.b16 %v50
  %v99 = vunpack.c.l.b16 %v51
  %v100 = vunpack.c.l.b16 %v52
  %v101 = vunpack.c.l.b16 %v53
  %v102 = vunpack.c.l.b16 %v54
  %v103 = vunpack.c.l.b16 %v55
  %v104 = vunpack.c.l.b16 %v56
  %v105 = vunpack.c.l.b16 %v57
  %v106 = vunpack.c.l.b16 %v58
  %v107 = vunpack.c.l.b16 %v59
  %v108 = vunpack.c.l.b16 %v60
  %v109 = vunpack.c.l.b16 %v61
  %v110 = vunpack.c.l.b16 %v62
  %v111 = vunpack.c.l.b16 %v63
  %v112 = vunpack.c.l.b16 %v64
  %v113 = vpack.c.b16 %v98, %v97
  %v114 = vpack.c.b16 %v100, %v99
  %v115 = vpack.c.b16 %v102, %v101
  %v116 = vpack.c.b16 %v104, %v103
  %v117 = vpack.c.b16 %v106, %v105
  %v118 = vpack.c.b16 %v108, %v107
  %v119 = vpack.c.b16 %v110, %v109
  %v120 = vpack.c.b16 %v112, %v111
  %v145 = vunpack.c.l.b16 %v65
  %v146 = vunpack.c.l.b16 %v66
  %v147 = vunpack.c.l.b16 %v67
  %v148 = vunpack.c.l.b16 %v68
  %v149 = vunpack.c.l.b16 %v69
  %v150 = vunpack.c.l.b16 %v70
  %v151 = vunpack.c.l.b16 %v71
  %v152 = vunpack.c.l.b16 %v72
  %v153 = vunpack.c.l.b16 %v73
  %v154 = vunpack.c.l.b16 %v74
  %v155 = vunpack.c.l.b16 %v75
  %v156 = vunpack.c.l.b16 %v76
  %v157 = vunpack.c.l.b16 %v77
  %v158 = vunpack.c.l.b16 %v78
  %v159 = vunpack.c.l.b16 %v79
  %v160 = vunpack.c.l.b16 %v80
  %v161 = vpack.c.b16 %v146, %v145
  %v162 = vpack.c.b16 %v148, %v147
  %v163 = vpack.c.b16 %v150, %v149
  %v164 = vpack.c.b16 %v152, %v151
  %v165 = vpack.c.b16 %v154, %v153
  %v166 = vpack.c.b16 %v156, %v155
  %v167 = vpack.c.b16 %v158, %v157
  %v168 = vpack.c.b16 %v160, %v159
  %177 = vmatpush.bf16.msra.mxu0 %v168
  %178 = vmatpush.bf16.msra.mxu0 %v167
  %179 = vmatpush.bf16.msra.mxu0 %v166
  %180 = vmatpush.bf16.msra.mxu0 %v165
  %181 = vmatpush.bf16.msra.mxu0 %v164
  %182 = vmatpush.bf16.msra.mxu0 %v163
  %183 = vmatpush.bf16.msra.mxu0 %v162
  %184 = vmatpush.bf16.msra.mxu0 %v161
  %185 = vmatmul.bf16.gmra.mxu0 %v113
  %v186 = vpop.f32.mrf.mxu0
  %v187 = vadd.f32 0.0, %v186
  %v188 = vpop.f32.mrf.mxu0
  %v189 = vadd.f32 0.0, %v188
  %190 = vmatmul.bf16.gmra.mxu0 %v114
  %v191 = vpop.f32.mrf.mxu0
  %v192 = vadd.f32 0.0, %v191
  %v193 = vpop.f32.mrf.mxu0
  %v194 = vadd.f32 0.0, %v193
  %195 = vmatmul.bf16.gmra.mxu0 %v115
  %v196 = vpop.f32.mrf.mxu0
  %v197 = vadd.f32 0.0, %v196
  %v198 = vpop.f32.mrf.mxu0
  %v199 = vadd.f32 0.0, %v198
  %200 = vmatmul.bf16.gmra.mxu0 %v116
  %v201 = vpop.f32.mrf.mxu0
  %v202 = vadd.f32 0.0, %v201
  %v203 = vpop.f32.mrf.mxu0
  %v204 = vadd.f32 0.0, %v203
  %205 = vmatmul.bf16.gmra.mxu0 %v117
  %v206 = vpop.f32.mrf.mxu0
  %v207 = vadd.f32 0.0, %v206
  %v208 = vpop.f32.mrf.mxu0
  %v209 = vadd.f32 0.0, %v208
  %210 = vmatmul.bf16.gmra.mxu0 %v118
  %v211 = vpop.f32.mrf.mxu0
  %v212 = vadd.f32 0.0, %v211
  %v213 = vpop.f32.mrf.mxu0
  %v214 = vadd.f32 0.0, %v213
  %215 = vmatmul.bf16.gmra.mxu0 %v119
  %v216 = vpop.f32.mrf.mxu0
  %v217 = vadd.f32 0.0, %v216
  %v218 = vpop.f32.mrf.mxu0
  %v219 = vadd.f32 0.0, %v218
  %220 = vmatmul.bf16.gmra.mxu0 %v120
  %v221 = vpop.f32.mrf.mxu0
  %v222 = vadd.f32 0.0, %v221
  %v223 = vpop.f32.mrf.mxu0
  %v224 = vadd.f32 0.0, %v223
  %225 = vdwg.mxu0
  %v226 = vadd.f32 %v33, %v187
  %v227 = vadd.f32 %v34, %v189
  %v228 = vadd.f32 %v35, %v192
  %v229 = vadd.f32 %v36, %v194
  %v230 = vadd.f32 %v37, %v197
  %v231 = vadd.f32 %v38, %v199
  %v232 = vadd.f32 %v39, %v202
  %v233 = vadd.f32 %v40, %v204
  %v234 = vadd.f32 %v41, %v207
  %v235 = vadd.f32 %v42, %v209
  %v236 = vadd.f32 %v43, %v212
  %v237 = vadd.f32 %v44, %v214
  %v238 = vadd.f32 %v45, %v217
  %v239 = vadd.f32 %v46, %v219
  %v240 = vadd.f32 %v47, %v222
  %v241 = vadd.f32 %v48, %v224
  %242 = vst [vmem:[#allocation2] sm:$0xff] %v226
  %243 = vst [vmem:[#allocation2 + $0x8] sm:$0xff] %v227
  %244 = vst [vmem:[#allocation2 + $0x10] sm:$0xff] %v228
  %245 = vst [vmem:[#allocation2 + $0x18] sm:$0xff] %v229
  %246 = vst [vmem:[#allocation2 + $0x20] sm:$0xff] %v230
  %247 = vst [vmem:[#allocation2 + $0x28] sm:$0xff] %v231
  %248 = vst [vmem:[#allocation2 + $0x30] sm:$0xff] %v232
  %249 = vst [vmem:[#allocation2 + $0x38] sm:$0xff] %v233
  %250 = vst [vmem:[#allocation2 + $0x40] sm:$0xff] %v234
  %251 = vst [vmem:[#allocation2 + $0x48] sm:$0xff] %v235
  %252 = vst [vmem:[#allocation2 + $0x50] sm:$0xff] %v236
  %253 = vst [vmem:[#allocation2 + $0x58] sm:$0xff] %v237
  %254 = vst [vmem:[#allocation2 + $0x60] sm:$0xff] %v238
  %255 = vst [vmem:[#allocation2 + $0x68] sm:$0xff] %v239
  %256 = vst [vmem:[#allocation2 + $0x70] sm:$0xff] %v240
  %257 = vst [vmem:[#allocation2 + $0x78] sm:$0xff] %v241
  // Predicated region
  $region14: #{_gcn_forward.4} parent=0 // pred_check
    %p258 = pneg %p13
  $region15: #{_gcn_forward.4} parent=0 // pred_check_branch
    %260 = sbr.rel (%p258) target = $region17
  $region16: #{_gcn_forward.4} parent=0 // pred_region
    %v261 = vld [vmem:[#allocation2] sm:$0xff]
    %v262 = vld [vmem:[#allocation2 + $0x8] sm:$0xff]
    %v263 = vld [vmem:[#allocation2 + $0x10] sm:$0xff]
    %v264 = vld [vmem:[#allocation2 + $0x18] sm:$0xff]
    %v265 = vld [vmem:[#allocation2 + $0x20] sm:$0xff]
    %v266 = vld [vmem:[#allocation2 + $0x28] sm:$0xff]
    %v267 = vld [vmem:[#allocation2 + $0x30] sm:$0xff]
    %v268 = vld [vmem:[#allocation2 + $0x38] sm:$0xff]
    %v269 = vld [vmem:[#allocation2 + $0x40] sm:$0xff]
    %v270 = vld [vmem:[#allocation2 + $0x48] sm:$0xff]
    %v271 = vld [vmem:[#allocation2 + $0x50] sm:$0xff]
    %v272 = vld [vmem:[#allocation2 + $0x58] sm:$0xff]
    %v273 = vld [vmem:[#allocation2 + $0x60] sm:$0xff]
    %v274 = vld [vmem:[#allocation2 + $0x68] sm:$0xff]
    %v275 = vld [vmem:[#allocation2 + $0x70] sm:$0xff]
    %v276 = vld [vmem:[#allocation2 + $0x78] sm:$0xff]
    %277 = vst [vmem:[%s2] sm:$0xff] %v261
    %278 = vst [vmem:[%s2 + $0x8] sm:$0xff] %v262
    %279 = vst [vmem:[%s2 + $0x10] sm:$0xff] %v263
    %280 = vst [vmem:[%s2 + $0x18] sm:$0xff] %v264
    %281 = vst [vmem:[%s2 + $0x20] sm:$0xff] %v265
    %282 = vst [vmem:[%s2 + $0x28] sm:$0xff] %v266
    %283 = vst [vmem:[%s2 + $0x30] sm:$0xff] %v267
    %284 = vst [vmem:[%s2 + $0x38] sm:$0xff] %v268
    %285 = vst [vmem:[%s2 + $0x40] sm:$0xff] %v269
    %286 = vst [vmem:[%s2 + $0x48] sm:$0xff] %v270
    %287 = vst [vmem:[%s2 + $0x50] sm:$0xff] %v271
    %288 = vst [vmem:[%s2 + $0x58] sm:$0xff] %v272
    %289 = vst [vmem:[%s2 + $0x60] sm:$0xff] %v273
    %290 = vst [vmem:[%s2 + $0x68] sm:$0xff] %v274
    %291 = vst [vmem:[%s2 + $0x70] sm:$0xff] %v275
    %292 = vst [vmem:[%s2 + $0x78] sm:$0xff] %v276
    %v293 = vadd.f32 %v261, %v262
    %v294 = vadd.f32 %v293, %v263
    %v295 = vadd.f32 %v294, %v264
    %v296 = vadd.f32 %v295, %v265
    %v297 = vadd.f32 %v296, %v266
    %v298 = vadd.f32 %v297, %v267
    %v299 = vadd.f32 %v298, %v268
    %v300 = vadd.f32 %v299, %v269
    %v301 = vadd.f32 %v300, %v270
    %v302 = vadd.f32 %v301, %v271
    %v303 = vadd.f32 %v302, %v272
    %v304 = vadd.f32 %v303, %v273
    %v305 = vadd.f32 %v304, %v274
    %v306 = vadd.f32 %v305, %v275
    %v307 = vadd.f32 %v306, %v276
    %v308 = vrot.slane %v307, 4
    %v309 = vadd.f32 %v307, %v308
    %v310 = vrot.slane %v309, 2
    %v311 = vadd.f32 %v309, %v310
    %v312 = vrot.slane %v311, 1
    %v313 = vadd.f32 %v311, %v312
    %v314 = vmul.f32 %v261, %v261
    %v315 = vmul.f32 %v262, %v262
    %v316 = vmul.f32 %v263, %v263
    %v317 = vmul.f32 %v264, %v264
    %v318 = vmul.f32 %v265, %v265
    %v319 = vmul.f32 %v266, %v266
    %v320 = vmul.f32 %v267, %v267
    %v321 = vmul.f32 %v268, %v268
    %v322 = vmul.f32 %v269, %v269
    %v323 = vmul.f32 %v270, %v270
    %v324 = vmul.f32 %v271, %v271
    %v325 = vmul.f32 %v272, %v272
    %v326 = vmul.f32 %v273, %v273
    %v327 = vmul.f32 %v274, %v274
    %v328 = vmul.f32 %v275, %v275
    %v329 = vmul.f32 %v276, %v276
    %v330 = vadd.f32 %v314, %v315
    %v331 = vadd.f32 %v330, %v316
    %v332 = vadd.f32 %v331, %v317
    %v333 = vadd.f32 %v332, %v318
    %v334 = vadd.f32 %v333, %v319
    %v335 = vadd.f32 %v334, %v320
    %v336 = vadd.f32 %v335, %v321
    %v337 = vadd.f32 %v336, %v322
    %v338 = vadd.f32 %v337, %v323
    %v339 = vadd.f32 %v338, %v324
    %v340 = vadd.f32 %v339, %v325
    %v341 = vadd.f32 %v340, %v326
    %v342 = vadd.f32 %v341, %v327
    %v343 = vadd.f32 %v342, %v328
    %v344 = vadd.f32 %v343, %v329
    %v345 = vrot.slane %v344, 4
    %v346 = vadd.f32 %v344, %v345
    %v347 = vrot.slane %v346, 2
    %v348 = vadd.f32 %v346, %v347
    %v349 = vrot.slane %v348, 1
    %v350 = vadd.f32 %v348, %v349
    %vm351 = vcmask 1040384
    %v352 = vsel %vm351, %v313, %v350
    %353 = vst [vmem:[%s3] sm:$0x3] %v352
  $region17: #{_gcn_forward.4} parent=0 // pred_fallthru
    _
  // Predicated region
  $region18: #{_gcn_forward.4} parent=0 // pred_check
    _
  $region19: #{_gcn_forward.4} parent=0 // pred_check_branch
    %355 = sbr.rel (0) target = $region21
  $region20: #{_gcn_forward.4} parent=0 // pred_region
    _
  $region21: #{_gcn_forward.4} parent=0 // pred_fallthru
    _
  // Predicated region
  $region22: #{_gcn_forward.4} parent=0 // pred_check
    _
  $region23: #{_gcn_forward.4} parent=0 // pred_check_branch
    %357 = sbr.rel (0) target = $region25
  $region24: #{_gcn_forward.4} parent=0 // pred_region
    _
  $region25: #{_gcn_forward.4} parent=0 // pred_fallthru
    _
  // Predicated region
  $region26: #{_gcn_forward.4} parent=0 // pred_check
    _
  $region27: #{_gcn_forward.4} parent=0 // pred_check_branch
    %359 = sbr.rel (0) target = $region29
  $region28: #{_gcn_forward.4} parent=0 // pred_region
    _
  $region29: #{_gcn_forward.4} parent=0 // pred_fallthru
    _
  // Predicated region
  $region30: #{_gcn_forward.4} parent=0 // pred_check
    _
  $region31: #{_gcn_forward.4} parent=0 // pred_check_branch
    %361 = sbr.rel (0) target = $region33
  $region32: #{_gcn_forward.4} parent=0 // pred_region
    _
  $region33: #{_gcn_forward.4} parent=0 // pred_fallthru
    _

</llo_original>
